<compile_context>
chip_gen: v5e
topology: v5e:2x2
jax: 0.10.0
libtpu: 0.0.40
codegen_flags: <defaults>
</compile_context>

<pallas_src>
import jax
import jax.numpy as jnp
import numpy as np
from jax import lax
from jax.experimental import pallas as pl
from jax.experimental.pallas import tpu as pltpu


# ----------------------------- Pallas kernels -----------------------------

def _convt_polyphase_kernel(x_ref, w9_ref, b4_ref, o_ref, xpad_ref):
    """Polyphase ConvTranspose2d(k=4, s=2, p=1) as a single im2col matmul.

    x_ref  : (1, H, W, Cin)
    w9_ref : (9*Cin, 4*Cout)   columns are parity-major (p = 2*py + px) blocks
    b4_ref : (1, 4*Cout)       bias tiled over the 4 output parities
    o_ref  : (1, H*W, 4*Cout)  parity-packed output (depth-to-space done by wrapper)
    xpad_ref: VMEM scratch (H+2, W+2, Cin) -- halo padding done in VMEM, not XLA.
    """
    _, H, W, Cin = x_ref.shape

    # 1-px zero halo in VMEM (no jnp.pad / HBM copy).
    xpad_ref[...] = jnp.zeros_like(xpad_ref)
    xpad_ref[1:H + 1, 1:W + 1, :] = x_ref[0]

    # im2col over the 3x3 neighbourhood -> one MXU matmul with K = 9*Cin
    # (vs. 16 matmuls with K = Cin over a zero-inserted tensor before).
    taps = []
    for i in range(3):
        for j in range(3):
            taps.append(xpad_ref[i:i + H, j:j + W, :])
    patches = jnp.concatenate(taps, axis=-1).reshape(H * W, 9 * Cin)

    y = jnp.dot(patches, w9_ref[...], preferred_element_type=jnp.float32)
    o_ref[0] = (y + b4_ref[...]).astype(o_ref.dtype)


def _ddc_stage(pad_ref, wdw_ref, bdw_ref, wpw_ref, bpw_ref, scale_ref, shift_ref,
               Hh, Ww):
    """Depthwise 3x3 (valid on the padded VMEM tile) + bias -> pointwise 1x1 + bias
    -> folded BatchNorm(eval) -> ReLU.  Returns (Hh*Ww, Cout) in f32."""
    Cin = pad_ref.shape[2]
    dw = jnp.zeros((Hh, Ww, Cin), jnp.float32)
    for ky in range(3):
        for kx in range(3):
            wk = wdw_ref[ky, kx, :].astype(jnp.float32).reshape(1, 1, Cin)
            dw = dw + pad_ref[ky:ky + Hh, kx:kx + Ww, :] * wk
    dw2 = dw.reshape(Hh * Ww, Cin) + bdw_ref[...]                    # depthwise bias
    pw = jnp.dot(dw2, wpw_ref[...].astype(jnp.float32),
                 preferred_element_type=jnp.float32) + bpw_ref[...]  # pointwise 1x1
    return jnp.maximum(pw * scale_ref[...] + shift_ref[...], 0.0)    # BN(eval) + ReLU


def _make_ddc_block_kernel(has_skip):
    """Fused DDCBlock: [DW3x3 + PW1x1 + BN(eval) + ReLU] x 2 in ONE kernel, with
    in-VMEM halo padding and (optionally) the in-kernel skip-channel concat."""

    def kernel(*args):
        if has_skip:
            (up_ref, xc_ref,
             wdw1, bdw1, wpw1, bpw1, s1, t1,
             wdw2, bdw2, wpw2, bpw2, s2, t2,
             o_ref, pad1, pad2) = args
        else:
            (up_ref,
             wdw1, bdw1, wpw1, bpw1, s1, t1,
             wdw2, bdw2, wpw2, bpw2, s2, t2,
             o_ref, pad1, pad2) = args

        _, Hh, Ww, C2 = o_ref.shape

        # ---- stage 1: channel concat of the skip input + halo pad, all in VMEM ----
        pad1[...] = jnp.zeros_like(pad1)
        if has_skip:
            h0 = jnp.concatenate([up_ref[0], xc_ref[0]], axis=-1)  # torch.cat(dim=1)
        else:
            h0 = up_ref[0]
        pad1[1:Hh + 1, 1:Ww + 1, :] = h0
        h1 = _ddc_stage(pad1, wdw1, bdw1, wpw1, bpw1, s1, t1, Hh, Ww)

        # ---- stage 2: stage-1 output never leaves VMEM ----
        pad2[...] = jnp.zeros_like(pad2)
        pad2[1:Hh + 1, 1:Ww + 1, :] = h1.reshape(Hh, Ww, C2)
        out = _ddc_stage(pad2, wdw2, bdw2, wpw2, bpw2, s2, t2, Hh, Ww)

        o_ref[0] = out.reshape(Hh, Ww, C2).astype(o_ref.dtype)

    return kernel


# ------------------------------- wrappers ---------------------------------

def _full_spec(arr):
    nd = arr.ndim
    return pl.BlockSpec(arr.shape, lambda n: (0,) * nd)


def conv_transpose_polyphase(x_nhwc, w9, b4, cout):
    """ConvTranspose2d(k=4, s=2, p=1) via polyphase matmul + wrapper depth-to-space."""
    N, H, W, Cin = x_nhwc.shape
    up_packed = pl.pallas_call(
        _convt_polyphase_kernel,
        out_shape=jax.ShapeDtypeStruct((N, H * W, 4 * cout), jnp.float32),
        grid=(N,),
        in_specs=[
            pl.BlockSpec((1, H, W, Cin), lambda n: (n, 0, 0, 0)),
            pl.BlockSpec((9 * Cin, 4 * cout), lambda n: (0, 0)),
            pl.BlockSpec((1, 4 * cout), lambda n: (0, 0)),
        ],
        out_specs=pl.BlockSpec((1, H * W, 4 * cout), lambda n: (n, 0, 0)),
        scratch_shapes=[pltpu.VMEM((H + 2, W + 2, Cin), jnp.float32)],
        compiler_params=pltpu.CompilerParams(dimension_semantics=("parallel",)),
    )(x_nhwc, w9, b4)
    # Depth-to-space (parity planes -> interleaved 2H x 2W image): layout glue only.
    u = up_packed.reshape(N, H, W, 2, 2, cout)
    u = jnp.transpose(u, (0, 1, 3, 2, 4, 5))
    return u.reshape(N, 2 * H, 2 * W, cout)


def ddc_block(up_nhwc, xc_nhwc, stage1, stage2):
    """Fused DDCBlock (two DepthWiseConv + BN(eval) + ReLU stages) in one pallas_call."""
    N, Hh, Ww, _ = up_nhwc.shape
    has_skip = xc_nhwc is not None
    acts = [up_nhwc] + ([xc_nhwc] if has_skip else [])
    params = list(stage1) + list(stage2)
    c1 = stage1[2].shape[0]   # wpw1: (C1, C2)
    c2 = stage1[2].shape[1]

    act_specs = [pl.BlockSpec((1, Hh, Ww, a.shape[3]), lambda n: (n, 0, 0, 0))
                 for a in acts]
    param_specs = [_full_spec(p) for p in params]

    return pl.pallas_call(
        _make_ddc_block_kernel(has_skip),
        out_shape=jax.ShapeDtypeStruct((N, Hh, Ww, c2), jnp.float32),
        grid=(N,),
        in_specs=act_specs + param_specs,
        out_specs=pl.BlockSpec((1, Hh, Ww, c2), lambda n: (n, 0, 0, 0)),
        scratch_shapes=[pltpu.VMEM((Hh + 2, Ww + 2, c1), jnp.float32),
                        pltpu.VMEM((Hh + 2, Ww + 2, c2), jnp.float32)],
        compiler_params=pltpu.CompilerParams(dimension_semantics=("parallel",)),
    )(*acts, *params)


# --------------------------- parameter setup -------------------------------

def _polyphase_weight(w_pt):
    """PyTorch ConvTranspose2d weight (Cin, Cout, 4, 4) -> (9*Cin, 4*Cout) polyphase
    im2col matrix.  Column block p = 2*py + px holds the taps for output parity
    (py, px); rows are tap-major over the 3x3 window of the 1-px padded input."""
    w = np.asarray(w_pt, np.float32)
    cin, cout = w.shape[0], w.shape[1]
    w9 = np.zeros((9, cin, 4, cout), np.float32)
    for py in range(2):
        for px in range(2):
            p = 2 * py + px
            for dy in range(2):
                for dx in range(2):
                    i, j = py + dy, px + dx                      # tap in 3x3 window
                    ky, kx = 3 - py - 2 * dy, 3 - px - 2 * dx    # original kernel tap
                    w9[i * 3 + j, :, p, :] = w[:, :, ky, kx]
    return jnp.asarray(w9.reshape(9 * cin, 4 * cout))


def _init_ddc_stage(key, cin, cout):
    k = jax.random.split(key, 8)
    wdw = 0.2 * jax.random.normal(k[0], (3, 3, cin), jnp.float32)   # PT (cin,1,3,3) -> HWC
    bdw = 0.1 * jax.random.normal(k[1], (1, cin), jnp.float32)
    wpw = 0.2 * jax.random.normal(k[2], (cin, cout), jnp.float32)   # PT (cout,cin,1,1) -> (cin,cout)
    bpw = 0.1 * jax.random.normal(k[3], (1, cout), jnp.float32)
    gamma = 1.0 + 0.1 * jax.random.normal(k[4], (cout,), jnp.float32)
    beta = 0.1 * jax.random.normal(k[5], (cout,), jnp.float32)
    rmean = 0.1 * jax.random.normal(k[6], (cout,), jnp.float32)
    rvar = jnp.abs(1.0 + 0.1 * jax.random.normal(k[7], (cout,), jnp.float32))
    eps = 1e-5
    # TODO(synk): BatchNorm2d implemented in eval mode (folded running stats);
    #             PyTorch-default train-mode batch statistics are not reproduced.
    scale = (gamma / jnp.sqrt(rvar + eps)).reshape(1, cout)
    shift = (beta - rmean * (gamma / jnp.sqrt(rvar + eps))).reshape(1, cout)
    return (wdw, bdw, wpw, bpw, scale, shift)


class DecoderBottleneck:
    """JAX/Pallas port of SemHybridNet.DecoderBottleneck (inference forward)."""

    def __init__(self, in_channels, out_channels, key):
        k = jax.random.split(key, 6)
        c_up = in_channels // 2
        # ConvTranspose weights kept in PyTorch layout (Cin, Cout, 4, 4) for the
        # reference; the polyphase im2col matrices are precomputed once here.
        self.w_up = 0.2 * jax.random.normal(k[0], (c_up, c_up, 4, 4), jnp.float32)
        self.b_up = 0.1 * jax.random.normal(k[1], (c_up,), jnp.float32)
        self.w_up2 = 0.2 * jax.random.normal(k[2], (64, 64, 4, 4), jnp.float32)
        self.b_up2 = 0.1 * jax.random.normal(k[3], (64,), jnp.float32)
        self.c_up = c_up
        self.w9_up = _polyphase_weight(self.w_up)
        self.b4_up = jnp.tile(self.b_up.reshape(1, c_up), (1, 4))
        self.w9_up2 = _polyphase_weight(self.w_up2)
        self.b4_up2 = jnp.tile(self.b_up2.reshape(1, 64), (1, 4))
        self.stage1 = _init_ddc_stage(k[4], in_channels, out_channels)
        self.stage2 = _init_ddc_stage(k[5], out_channels, out_channels)

    def __call__(self, x_nchw, x_concat_nchw=None):
        x = jnp.transpose(x_nchw, (0, 2, 3, 1))  # NCHW -> NHWC (boundary glue)
        if x_concat_nchw is not None:
            up = conv_transpose_polyphase(x, self.w9_up, self.b4_up, self.c_up)
            xc = jnp.transpose(x_concat_nchw, (0, 2, 3, 1))
            out = ddc_block(up, xc, self.stage1, self.stage2)   # concat done in-kernel
        else:
            # up_2 branch: requires x to have 64 channels (as in the PyTorch module)
            up = conv_transpose_polyphase(x, self.w9_up2, self.b4_up2, 64)
            out = ddc_block(up, None, self.stage1, self.stage2)
        return jnp.transpose(out, (0, 3, 1, 2))  # back to NCHW


# --------------------------- pure-JAX reference -----------------------------

def _reference_forward(model, x_nchw, x_concat_nchw):
    x = jnp.transpose(x_nchw, (0, 2, 3, 1))
    w = jnp.flip(model.w_up, axis=(2, 3)).transpose(2, 3, 0, 1)
    up = lax.conv_general_dilated(
        x, w, window_strides=(1, 1), padding=((2, 2), (2, 2)),
        lhs_dilation=(2, 2),
        dimension_numbers=('NHWC', 'HWIO', 'NHWC')) + model.b_up
    xc = jnp.transpose(x_concat_nchw, (0, 2, 3, 1))
    h = jnp.concatenate([up, xc], axis=-1)

    def stage(h, params):
        wdw, bdw, wpw, bpw, scale, shift = params
        cin = h.shape[-1]
        dw = lax.conv_general_dilated(
            h, wdw[:, :, None, :], window_strides=(1, 1),
            padding=((1, 1), (1, 1)), feature_group_count=cin,
            dimension_numbers=('NHWC', 'HWIO', 'NHWC')) + bdw[0]
        pw = jnp.einsum('nhwc,cd->nhwd', dw, wpw) + bpw[0]
        return jnp.maximum(pw * scale[0] + shift[0], 0.0)

    out = stage(stage(h, model.stage1), model.stage2)
    return jnp.transpose(out, (0, 3, 1, 2))


# --------------------------------- main -------------------------------------

if __name__ == "__main__":
    key = jax.random.PRNGKey(0)
    k_model, k_x, k_xc = jax.random.split(key, 3)

    in_channels, out_channels = 16, 16
    N, H, W = 2, 8, 8

    model = DecoderBottleneck(in_channels, out_channels, k_model)
    x = jax.random.normal(k_x, (N, in_channels // 2, H, W), jnp.float32)
    x_concat = jax.random.normal(k_xc, (N, in_channels // 2, 2 * H, 2 * W), jnp.float32)

    out = model(x, x_concat)
    out = jax.block_until_ready(out)
    assert out.shape == (N, out_channels, 2 * H, 2 * W)

    ref = _reference_forward(model, x, x_concat)
    np.testing.assert_allclose(np.asarray(out), np.asarray(ref), rtol=1e-4, atol=1e-4)

    print("KERNEL_OK")
</pallas_src>

<mosaic_0001>
module attributes {stable_mosaic.version = 11 : i64} {
  func.func @_convt_polyphase_kernel(%arg0: i32, %arg1: memref<1x8x8x8xf32, #tpu.memory_space<vmem>>, %arg2: memref<72x32xf32, #tpu.memory_space<vmem>>, %arg3: memref<1x32xf32, #tpu.memory_space<vmem>>, %arg4: memref<1x64x32xf32, #tpu.memory_space<vmem>>, %arg5: memref<10x10x8xf32, #tpu.memory_space<vmem>>) attributes {dimension_semantics = [#tpu.dimension_semantics<parallel>], iteration_bounds = array<i64: 2>, scalar_prefetch = 0 : i64, scratch_operands = 1 : i64, tpu.core_type = #tpu.core_type<tc>, window_params = [{transform_indices = @transform_0, window_bounds = array<i64: 1, 8, 8, 8>}, {pipeline_mode = #tpu.pipeline_mode<synchronous>, transform_indices = @transform_1, window_bounds = array<i64: 72, 32>}, {pipeline_mode = #tpu.pipeline_mode<synchronous>, transform_indices = @transform_2, window_bounds = array<i64: 1, 32>}, {transform_indices = @transform_3, window_bounds = array<i64: 1, 64, 32>}]} {
    %cst = arith.constant 0.000000e+00 : f32
    %0 = vector.broadcast %cst : f32 to vector<10x10x8xf32>
    %c0 = arith.constant 0 : index
    %c0_0 = arith.constant 0 : index
    %c0_1 = arith.constant 0 : index
    %1 = vector.load %arg5[%c0, %c0_0, %c0_1] : memref<10x10x8xf32, #tpu.memory_space<vmem>>, vector<10x10x8xf32>
    tpu.vector_store %arg5[%c0, %c0_0, %c0_1], %0 {strides = array<i32>} : memref<10x10x8xf32, #tpu.memory_space<vmem>>, vector<10x10x8xf32>,
    %c0_2 = arith.constant 0 : index
    %c0_3 = arith.constant 0 : index
    %c0_4 = arith.constant 0 : index
    %c0_5 = arith.constant 0 : index
    %2 = vector.load %arg1[%c0_2, %c0_3, %c0_4, %c0_5] : memref<1x8x8x8xf32, #tpu.memory_space<vmem>>, vector<1x8x8x8xf32>
    %3 = vector.shape_cast %2 : vector<1x8x8x8xf32> to vector<8x8x8xf32>
    %c1 = arith.constant 1 : index
    %c1_6 = arith.constant 1 : index
    %c0_7 = arith.constant 0 : index
    %4 = vector.load %arg5[%c1, %c1_6, %c0_7] : memref<10x10x8xf32, #tpu.memory_space<vmem>>, vector<8x8x8xf32>
    tpu.vector_store %arg5[%c1, %c1_6, %c0_7], %3 {strides = array<i32>} : memref<10x10x8xf32, #tpu.memory_space<vmem>>, vector<8x8x8xf32>,
    %c0_8 = arith.constant 0 : index
    %c0_9 = arith.constant 0 : index
    %c0_10 = arith.constant 0 : index
    %5 = vector.load %arg5[%c0_8, %c0_9, %c0_10] : memref<10x10x8xf32, #tpu.memory_space<vmem>>, vector<8x8x8xf32>
    %c0_11 = arith.constant 0 : index
    %c1_12 = arith.constant 1 : index
    %c0_13 = arith.constant 0 : index
    %6 = vector.load %arg5[%c0_11, %c1_12, %c0_13] : memref<10x10x8xf32, #tpu.memory_space<vmem>>, vector<8x8x8xf32>
    %c0_14 = arith.constant 0 : index
    %c2 = arith.constant 2 : index
    %c0_15 = arith.constant 0 : index
    %7 = vector.load %arg5[%c0_14, %c2, %c0_15] : memref<10x10x8xf32, #tpu.memory_space<vmem>>, vector<8x8x8xf32>
    %c1_16 = arith.constant 1 : index
    %c0_17 = arith.constant 0 : index
    %c0_18 = arith.constant 0 : index
    %8 = vector.load %arg5[%c1_16, %c0_17, %c0_18] : memref<10x10x8xf32, #tpu.memory_space<vmem>>, vector<8x8x8xf32>
    %c1_19 = arith.constant 1 : index
    %c1_20 = arith.constant 1 : index
    %c0_21 = arith.constant 0 : index
    %9 = vector.load %arg5[%c1_19, %c1_20, %c0_21] : memref<10x10x8xf32, #tpu.memory_space<vmem>>, vector<8x8x8xf32>
    %c1_22 = arith.constant 1 : index
    %c2_23 = arith.constant 2 : index
    %c0_24 = arith.constant 0 : index
    %10 = vector.load %arg5[%c1_22, %c2_23, %c0_24] : memref<10x10x8xf32, #tpu.memory_space<vmem>>, vector<8x8x8xf32>
    %c2_25 = arith.constant 2 : index
    %c0_26 = arith.constant 0 : index
    %c0_27 = arith.constant 0 : index
    %11 = vector.load %arg5[%c2_25, %c0_26, %c0_27] : memref<10x10x8xf32, #tpu.memory_space<vmem>>, vector<8x8x8xf32>
    %c2_28 = arith.constant 2 : index
    %c1_29 = arith.constant 1 : index
    %c0_30 = arith.constant 0 : index
    %12 = vector.load %arg5[%c2_28, %c1_29, %c0_30] : memref<10x10x8xf32, #tpu.memory_space<vmem>>, vector<8x8x8xf32>
    %c2_31 = arith.constant 2 : index
    %c2_32 = arith.constant 2 : index
    %c0_33 = arith.constant 0 : index
    %13 = vector.load %arg5[%c2_31, %c2_32, %c0_33] : memref<10x10x8xf32, #tpu.memory_space<vmem>>, vector<8x8x8xf32>
    %14 = tpu.concatenate %5, %6, %7, %8, %9, %10, %11, %12, %13 in 2 : vector<8x8x8xf32>, vector<8x8x8xf32>, vector<8x8x8xf32>, vector<8x8x8xf32>, vector<8x8x8xf32>, vector<8x8x8xf32>, vector<8x8x8xf32>, vector<8x8x8xf32>, vector<8x8x8xf32> -> vector<8x8x72xf32>
    %15 = vector.shape_cast %14 : vector<8x8x72xf32> to vector<64x72xf32>
    %c0_34 = arith.constant 0 : index
    %c0_35 = arith.constant 0 : index
    %16 = vector.load %arg2[%c0_34, %c0_35] : memref<72x32xf32, #tpu.memory_space<vmem>>, vector<72x32xf32>
    %cst_36 = arith.constant dense<0.000000e+00> : vector<64x32xf32>
    %17 = tpu.matmul %15, %16, %cst_36 {dimension_numbers = #tpu.dot_dimension_numbers<[1], [0], [0], [1], [0, 0, 1, 1], [], []>} : vector<64x72xf32>, vector<72x32xf32>, vector<64x32xf32> -> vector<64x32xf32>
    %c0_37 = arith.constant 0 : index
    %c0_38 = arith.constant 0 : index
    %18 = vector.load %arg3[%c0_37, %c0_38] : memref<1x32xf32, #tpu.memory_space<vmem>>, vector<1x32xf32>
    %19 = vector.broadcast %18 : vector<1x32xf32> to vector<64x32xf32>
    %20 = arith.addf %17, %19 : vector<64x32xf32>
    %c0_39 = arith.constant 0 : index
    %c0_40 = arith.constant 0 : index
    %c0_41 = arith.constant 0 : index
    %21 = vector.load %arg4[%c0_39, %c0_40, %c0_41] : memref<1x64x32xf32, #tpu.memory_space<vmem>>, vector<1x64x32xf32>
    %22 = vector.shape_cast %21 : vector<1x64x32xf32> to vector<64x32xf32>
    %23 = vector.shape_cast %20 : vector<64x32xf32> to vector<1x64x32xf32>
    tpu.vector_store %arg4[%c0_39, %c0_40, %c0_41], %23 {strides = array<i32>} : memref<1x64x32xf32, #tpu.memory_space<vmem>>, vector<1x64x32xf32>,
    return
  }
  func.func @transform_0(%arg0: i32) -> (i32, i32, i32, i32) {
    %c0_i32 = arith.constant 0 : i32
    %c0_i32_0 = arith.constant 0 : i32
    %c0_i32_1 = arith.constant 0 : i32
    %c0_i32_2 = arith.constant 0 : i32
    return %arg0, %c0_i32, %c0_i32_0, %c0_i32_1 : i32, i32, i32, i32
  }
  func.func @transform_1(%arg0: i32) -> (i32, i32) {
    %c0_i32 = arith.constant 0 : i32
    %c0_i32_0 = arith.constant 0 : i32
    %c0_i32_1 = arith.constant 0 : i32
    return %c0_i32, %c0_i32_0 : i32, i32
  }
  func.func @transform_2(%arg0: i32) -> (i32, i32) {
    %c0_i32 = arith.constant 0 : i32
    %c0_i32_0 = arith.constant 0 : i32
    %c0_i32_1 = arith.constant 0 : i32
    return %c0_i32, %c0_i32_0 : i32, i32
  }
  func.func @transform_3(%arg0: i32) -> (i32, i32, i32) {
    %c0_i32 = arith.constant 0 : i32
    %c0_i32_0 = arith.constant 0 : i32
    %c0_i32_1 = arith.constant 0 : i32
    return %arg0, %c0_i32, %c0_i32_0 : i32, i32, i32
  }
}

</mosaic_0001>

<llo_original>
// kernel: tpu_custom_call.1
$region0: #{tpu_custom_call.1}
  #allocation0 [shape = 'u32[]', space=smem, size = 0x4, offset = 0x4, fixed_abs, tag = 'smem constant byte address 0x4 - core index']
  #allocation1 [shape = 'u32[72,128]{1,0:T(1,128)}', space=vmem, size = 0x9000, scoped, tag = 'internal scratch']
  #allocation2 [shape = 'f32[10,10,8]{2,1,0:T(8,128)}', space=vmem, size = 0x14000, scoped, tag = 'scratch operand']
  %s0 = inlined_call_operand.hbm [shape: f32[2,8,8,8], index: 0, kind: input, shape index: {}]
  %s1 = inlined_call_operand.vmem [shape: f32[72,32], index: 1, kind: input, shape index: {}]
  %s2 = inlined_call_operand.vmem [shape: f32[1,32], index: 2, kind: input, shape index: {}]
  %s3 = inlined_call_operand.vmem [shape: f32[2,64,32], index: 3, kind: output, shape index: {}]
  %s4 = sld [smem:[#allocation0]]
  $region49: #{tpu_custom_call.1} parent=0
    _
  %s6 = ssub.s32 1, %s4
  %s7 = scalar_select 0, %s6, %s4
  $region1: #{tpu_custom_call.1} parent=0
    #allocation3 [shape = 'u8[65536]{0}', space=vmem, size = 0x10000, scoped, tag = 'input window, operand 0']
    #allocation4 [shape = 's32[2]{0}', space=sflag, size = 0x8, scoped, tag = 'scoped memory for tpu_custom_call.1']
    %8 = vsyncpa [#allocation4], 0
    %s9 = scalar_lea.sflag [#allocation4], 1
    %10 = vsyncpa %s9, 0
    loop: start=0, step=1, limit=4
    $region2: #{tpu_custom_call.1} parent=1 // loop_pre_header
      _
    $region3: #{tpu_custom_call.1} parent=1 // loop_header
      %s12 = sphi 0, %s16
      %p13 = scmp.ge.s32.totalorder %s12, 4
      %s22 = sphi 0, %s24
      %s25 = sphi 0, %s22
      %s26 = sphi 0, %s25
      %s42 = sphi 0, %s26
      %s46 = sphi 0, %s46
      %s48 = sphi 0, %s46
      %s49 = sphi 0, %s48
      %s63 = sphi 0, %s49
      %s67 = sphi 0, %s67
      %s69 = sphi 0, %s67
      %s70 = sphi 0, %s69
      %s84 = sphi 0, %s70
      %s90 = sphi 0, %s92
      %s93 = sphi 0, %s90
      %s94 = sphi 0, %s93
      %s110 = sphi 0, %s94
    $region4: #{tpu_custom_call.1} parent=1 // loop_header_branch
      %15 = sbr.rel (%p13) target = $region8
    $region5: #{tpu_custom_call.1} parent=1 // loop_body
      %s17 = ssub.s32 %s12, 1
      %s18 = ssub.s32 %s12, 2
      %s19 = sadd.s32 %s12, 1
      %s20 = ssub.s32 %s12, %s19
      %p21 = scmp.eq.s32.totalorder %s20, 0
      %s23 = sadd.s32 %s22, 1
      %s24 = scalar_select %p21, %s22, %s23
      %p27 = pneg %p21
      %p28 = scmp.eq.s32.totalorder %s12, 1
      %p29 = por %p27, %p28
      %p30 = scmp.ne.s32.totalorder %s22, %s25
      %p31 = scmp.eq.s32.totalorder %s12, 0
      %p32 = por %p30, %p31
      %p33 = scmp.ne.s32.totalorder %s22, %s25
      %p34 = scmp.eq.s32.totalorder %s17, 1
      %p35 = por %p33, %p34
      %p36 = scmp.ne.s32.totalorder %s25, %s26
      %p37 = scmp.eq.s32.totalorder %s17, 0
      %p38 = por %p36, %p37
      %p39 = scmp.ne.s32.totalorder %s25, %s26
      %p40 = scmp.eq.s32.totalorder %s18, 1
      %p41 = por %p39, %p40
      %p43 = scmp.ne.s32.totalorder %s26, %s42
      %p44 = scmp.eq.s32.totalorder %s18, 0
      %p45 = por %p43, %p44
      %s47 = sadd.s32 %s46, 1
      %p50 = scmp.eq.s32.totalorder %s12, 1
      %p51 = scmp.ne.s32.totalorder %s46, %s48
      %p52 = scmp.eq.s32.totalorder %s12, 0
      %p53 = por %p51, %p52
      %p54 = scmp.ne.s32.totalorder %s46, %s48
      %p55 = scmp.eq.s32.totalorder %s17, 1
      %p56 = por %p54, %p55
      %p57 = scmp.ne.s32.totalorder %s48, %s49
      %p58 = scmp.eq.s32.totalorder %s17, 0
      %p59 = por %p57, %p58
      %p60 = scmp.ne.s32.totalorder %s48, %s49
      %p61 = scmp.eq.s32.totalorder %s18, 1
      %p62 = por %p60, %p61
      %p64 = scmp.ne.s32.totalorder %s49, %s63
      %p65 = scmp.eq.s32.totalorder %s18, 0
      %p66 = por %p64, %p65
      %s68 = sadd.s32 %s67, 1
      %p71 = scmp.eq.s32.totalorder %s12, 1
      %p72 = scmp.ne.s32.totalorder %s67, %s69
      %p73 = scmp.eq.s32.totalorder %s12, 0
      %p74 = por %p72, %p73
      %p75 = scmp.ne.s32.totalorder %s67, %s69
      %p76 = scmp.eq.s32.totalorder %s17, 1
      %p77 = por %p75, %p76
      %p78 = scmp.ne.s32.totalorder %s69, %s70
      %p79 = scmp.eq.s32.totalorder %s17, 0
      %p80 = por %p78, %p79
      %p81 = scmp.ne.s32.totalorder %s69, %s70
      %p82 = scmp.eq.s32.totalorder %s18, 1
      %p83 = por %p81, %p82
      %p85 = scmp.ne.s32.totalorder %s70, %s84
      %p86 = scmp.eq.s32.totalorder %s18, 0
      %p87 = por %p85, %p86
      %s88 = ssub.s32 %s12, %s19
      %p89 = scmp.eq.s32.totalorder %s88, 0
      %s91 = sadd.s32 %s90, 1
      %s92 = scalar_select %p89, %s90, %s91
      %p95 = pneg %p89
      %p96 = scmp.eq.s32.totalorder %s12, 1
      %p97 = por %p95, %p96
      %p98 = scmp.ne.s32.totalorder %s90, %s93
      %p99 = scmp.eq.s32.totalorder %s12, 0
      %p100 = por %p98, %p99
      %p101 = scmp.ne.s32.totalorder %s90, %s93
      %p102 = scmp.eq.s32.totalorder %s17, 1
      %p103 = por %p101, %p102
      %p104 = scmp.ne.s32.totalorder %s93, %s94
      %p105 = scmp.eq.s32.totalorder %s17, 0
      %p106 = por %p104, %p105
      %p107 = scmp.ne.s32.totalorder %s93, %s94
      %p108 = scmp.eq.s32.totalorder %s18, 1
      %p109 = por %p107, %p108
      %p111 = scmp.ne.s32.totalorder %s94, %s110
      %p112 = scmp.eq.s32.totalorder %s18, 0
      %p113 = por %p111, %p112
      %p114 = scmp.le.s32.totalorder 1, %s12
      %p115 = scmp.lt.s32.totalorder %s12, 3
      %p116 = pnand %p114, %p115
      %p117 = pneg %p116
      // Predicated region
      $region9: #{tpu_custom_call.1} parent=5 // pred_check
        _
      $region10: #{tpu_custom_call.1} parent=5 // pred_check_branch
        %119 = sbr.rel (%p116) target = $region12
      $region11: #{tpu_custom_call.1} parent=5 // pred_region
        %s120 = ssub.s32 %s12, 1
        // Predicated region
        $region13: #{tpu_custom_call.1} parent=11 // pred_check
          %p121 = pneg %p59
        $region14: #{tpu_custom_call.1} parent=11 // pred_check_branch
          %123 = sbr.rel (%p121) target = $region16
        $region15: #{tpu_custom_call.1} parent=11 // pred_region
          _
        $region16: #{tpu_custom_call.1} parent=11 // pred_fallthru
          _
        // Predicated region
        $region17: #{tpu_custom_call.1} parent=11 // pred_check
          %p124 = pneg %p80
        $region18: #{tpu_custom_call.1} parent=11 // pred_check_branch
          %126 = sbr.rel (%p124) target = $region20
        $region19: #{tpu_custom_call.1} parent=11 // pred_region
          _
        $region20: #{tpu_custom_call.1} parent=11 // pred_fallthru
          _
      $region12: #{tpu_custom_call.1} parent=5 // pred_fallthru
        _
      %p127 = scmp.lt.s32.totalorder %s12, 2
      // Predicated region
      $region21: #{tpu_custom_call.1} parent=5 // pred_check
        %p128 = pneg %p127
      $region22: #{tpu_custom_call.1} parent=5 // pred_check_branch
        %130 = sbr.rel (%p128) target = $region24
      $region23: #{tpu_custom_call.1} parent=5 // pred_region
        // Predicated region
        $region25: #{tpu_custom_call.1} parent=23 // pred_check
          %p131 = pneg %p32
        $region26: #{tpu_custom_call.1} parent=23 // pred_check_branch
          %133 = sbr.rel (%p131) target = $region28
        $region27: #{tpu_custom_call.1} parent=23 // pred_region
          %s134 = sand.u32 %s22, 1
          %s135 = scalar_lea.sflag [#allocation4], %s134
          %s136 = sand.u32 %s22, 1
          %s137 = smul.addr %s136, 64
          %s138 = scalar_lea.vmem [#allocation3], %s137
          %140 = vsyncadd %s135, 0
          %s141 = smul.addr %s12, 8
          %s142 = smul.addr %s141, 8
          %s143 = scalar_lea.hbm %s0, %s142
          %s144 = sshll.u32 %s143, 4
          %s145 = int_to_ptr.hbm [resolvable:$true] %s144
          %s146 = sshll.u32 %s138, 4
          %s147 = int_to_ptr.vmem [resolvable:$true] %s146
          %152 = dma.hbm_to_vmem [thread:$0]  %s145, 1024, %s147, %s135, 128, 128, 8
        $region28: #{tpu_custom_call.1} parent=23 // pred_fallthru
          _
      $region24: #{tpu_custom_call.1} parent=5 // pred_fallthru
        _
      %p153 = scmp.le.s32.totalorder 1, %s12
      %p154 = scmp.lt.s32.totalorder %s12, 3
      %p155 = pnand %p153, %p154
      %p156 = pneg %p155
      // Predicated region
      $region29: #{tpu_custom_call.1} parent=5 // pred_check
        _
      $region30: #{tpu_custom_call.1} parent=5 // pred_check_branch
        %158 = sbr.rel (%p155) target = $region32
      $region31: #{tpu_custom_call.1} parent=5 // pred_region
        %s159 = ssub.s32 %s12, 1
        %s160 = sand.u32 %s25, 1
        %s161 = scalar_lea.sflag [#allocation4], %s160
        %s162 = sand.u32 %s25, 1
        %s163 = smul.addr %s162, 64
        %s164 = scalar_lea.vmem [#allocation3], %s163
        // Predicated region
        $region33: #{tpu_custom_call.1} parent=31 // pred_check
          %p165 = pneg %p38
        $region34: #{tpu_custom_call.1} parent=31 // pred_check_branch
          %167 = sbr.rel (%p165) target = $region36
        $region35: #{tpu_custom_call.1} parent=31 // pred_region
          %169 = dma.done %s161, 1024
        $region36: #{tpu_custom_call.1} parent=31 // pred_fallthru
          _
        %s170 = sand.u32 %s25, 1
        %s171 = scalar_lea.sflag [#allocation4], %s170
        %s172 = sand.u32 %s25, 1
        %s173 = smul.addr %s172, 64
        %s174 = scalar_lea.vmem [#allocation3], %s173
        %p175 = pneg %p38
        %p176 = pneg %p35
        %p177 = pneg %p59
        %p178 = pneg %p56
        %p179 = pneg %p80
        %p180 = pneg %p77
        %p181 = pneg %p106
        %p182 = pneg %p103
        %p183 = scmp.lt.s32.totalorder %s17, 1
        %s184 = scalar_select %p183, %s17, 1
        %s185 = smul.addr %s184, 8
        %s186 = smul.addr %s185, 8
        %s187 = scalar_lea.vmem %s3, %s186
        %p188 = scmp.lt.s32.totalorder %s17, 1
        %s189 = scalar_select %p188, %s17, 1
        %s190 = smul.addr %s189, 8
        %s191 = smul.addr %s190, 8
        %s192 = scalar_lea.vmem %s3, %s191
        %vm193 = vcmask 64512
        %194 = vst.msk [vmem:[#allocation2] sm:$0xff] %vm193, 0.0
        %vm195 = vcmask 58368
        %196 = vst.msk [vmem:[#allocation2 + $0x8] sm:$0x3] %vm195, 0.0
        %197 = vst.msk [vmem:[#allocation2 + $0x10] sm:$0xff] %vm193, 0.0
        %198 = vst.msk [vmem:[#allocation2 + $0x18] sm:$0x3] %vm195, 0.0
        %199 = vst.msk [vmem:[#allocation2 + $0x20] sm:$0xff] %vm193, 0.0
        %200 = vst.msk [vmem:[#allocation2 + $0x28] sm:$0x3] %vm195, 0.0
        %201 = vst.msk [vmem:[#allocation2 + $0x30] sm:$0xff] %vm193, 0.0
        %202 = vst.msk [vmem:[#allocation2 + $0x38] sm:$0x3] %vm195, 0.0
        %203 = vst.msk [vmem:[#allocation2 + $0x40] sm:$0xff] %vm193, 0.0
        %204 = vst.msk [vmem:[#allocation2 + $0x48] sm:$0x3] %vm195, 0.0
        %205 = vst.msk [vmem:[#allocation2 + $0x50] sm:$0xff] %vm193, 0.0
        %206 = vst.msk [vmem:[#allocation2 + $0x58] sm:$0x3] %vm195, 0.0
        %207 = vst.msk [vmem:[#allocation2 + $0x60] sm:$0xff] %vm193, 0.0
        %208 = vst.msk [vmem:[#allocation2 + $0x68] sm:$0x3] %vm195, 0.0
        %209 = vst.msk [vmem:[#allocation2 + $0x70] sm:$0xff] %vm193, 0.0
        %210 = vst.msk [vmem:[#allocation2 + $0x78] sm:$0x3] %vm195, 0.0
        %211 = vst.msk [vmem:[#allocation2 + $0x80] sm:$0xff] %vm193, 0.0
        %212 = vst.msk [vmem:[#allocation2 + $0x88] sm:$0x3] %vm195, 0.0
        %213 = vst.msk [vmem:[#allocation2 + $0x90] sm:$0xff] %vm193, 0.0
        %214 = vst.msk [vmem:[#allocation2 + $0x98] sm:$0x3] %vm195, 0.0
        %v215 = vld [vmem:[%s164] sm:$0xff]
        %v216 = vld [vmem:[%s164 + $0x8] sm:$0xff]
        %v217 = vld [vmem:[%s164 + $0x10] sm:$0xff]
        %v218 = vld [vmem:[%s164 + $0x18] sm:$0xff]
        %v219 = vld [vmem:[%s164 + $0x20] sm:$0xff]
        %v220 = vld [vmem:[%s164 + $0x28] sm:$0xff]
        %v221 = vld [vmem:[%s164 + $0x30] sm:$0xff]
        %v222 = vld [vmem:[%s164 + $0x38] sm:$0xff]
        %s223 = scalar_lea.vmem [#allocation2], 16
        %224 = vst.msk [vmem:[%s223 + $0x1] sm:$0xff] %vm193, %v215
        %225 = vst.msk [vmem:[%s223 + $0x11] sm:$0xff] %vm193, %v216
        %226 = vst.msk [vmem:[%s223 + $0x21] sm:$0xff] %vm193, %v217
        %227 = vst.msk [vmem:[%s223 + $0x31] sm:$0xff] %vm193, %v218
        %228 = vst.msk [vmem:[%s223 + $0x41] sm:$0xff] %vm193, %v219
        %229 = vst.msk [vmem:[%s223 + $0x51] sm:$0xff] %vm193, %v220
        %230 = vst.msk [vmem:[%s223 + $0x61] sm:$0xff] %vm193, %v221
        %231 = vst.msk [vmem:[%s223 + $0x71] sm:$0xff] %vm193, %v222
        %v232 = vld [vmem:[#allocation2] sm:$0xff]
        %v233 = vld [vmem:[#allocation2 + $0x10] sm:$0xff]
        %v234 = vld [vmem:[#allocation2 + $0x20] sm:$0xff]
        %v235 = vld [vmem:[#allocation2 + $0x30] sm:$0xff]
        %v236 = vld [vmem:[#allocation2 + $0x40] sm:$0xff]
        %v237 = vld [vmem:[#allocation2 + $0x50] sm:$0xff]
        %v238 = vld [vmem:[#allocation2 + $0x60] sm:$0xff]
        %v239 = vld [vmem:[#allocation2 + $0x70] sm:$0xff]
        %v240 = vld [vmem:[#allocation2 + $0x1] sm:$0xff]
        %v241 = vld [vmem:[#allocation2 + $0x11] sm:$0xff]
        %v242 = vld [vmem:[#allocation2 + $0x21] sm:$0xff]
        %v243 = vld [vmem:[#allocation2 + $0x31] sm:$0xff]
        %v244 = vld [vmem:[#allocation2 + $0x41] sm:$0xff]
        %v245 = vld [vmem:[#allocation2 + $0x51] sm:$0xff]
        %v246 = vld [vmem:[#allocation2 + $0x61] sm:$0xff]
        %v247 = vld [vmem:[#allocation2 + $0x71] sm:$0xff]
        %v248 = vld [vmem:[#allocation2 + $0x2] sm:$0xff]
        %v249 = vld [vmem:[#allocation2 + $0x12] sm:$0xff]
        %v250 = vld [vmem:[#allocation2 + $0x22] sm:$0xff]
        %v251 = vld [vmem:[#allocation2 + $0x32] sm:$0xff]
        %v252 = vld [vmem:[#allocation2 + $0x42] sm:$0xff]
        %v253 = vld [vmem:[#allocation2 + $0x52] sm:$0xff]
        %v254 = vld [vmem:[#allocation2 + $0x62] sm:$0xff]
        %v255 = vld [vmem:[#allocation2 + $0x72] sm:$0xff]
        %v256 = vld [vmem:[%s223] sm:$0xff]
        %v257 = vld [vmem:[%s223 + $0x10] sm:$0xff]
        %v258 = vld [vmem:[%s223 + $0x20] sm:$0xff]
        %v259 = vld [vmem:[%s223 + $0x30] sm:$0xff]
        %v260 = vld [vmem:[%s223 + $0x40] sm:$0xff]
        %v261 = vld [vmem:[%s223 + $0x50] sm:$0xff]
        %v262 = vld [vmem:[%s223 + $0x60] sm:$0xff]
        %v263 = vld [vmem:[%s223 + $0x70] sm:$0xff]
        %v264 = vld [vmem:[%s223 + $0x1] sm:$0xff]
        %v265 = vld [vmem:[%s223 + $0x11] sm:$0xff]
        %v266 = vld [vmem:[%s223 + $0x21] sm:$0xff]
        %v267 = vld [vmem:[%s223 + $0x31] sm:$0xff]
        %v268 = vld [vmem:[%s223 + $0x41] sm:$0xff]
        %v269 = vld [vmem:[%s223 + $0x51] sm:$0xff]
        %v270 = vld [vmem:[%s223 + $0x61] sm:$0xff]
        %v271 = vld [vmem:[%s223 + $0x71] sm:$0xff]
        %v272 = vld [vmem:[%s223 + $0x2] sm:$0xff]
        %v273 = vld [vmem:[%s223 + $0x12] sm:$0xff]
        %v274 = vld [vmem:[%s223 + $0x22] sm:$0xff]
        %v275 = vld [vmem:[%s223 + $0x32] sm:$0xff]
        %v276 = vld [vmem:[%s223 + $0x42] sm:$0xff]
        %v277 = vld [vmem:[%s223 + $0x52] sm:$0xff]
        %v278 = vld [vmem:[%s223 + $0x62] sm:$0xff]
        %v279 = vld [vmem:[%s223 + $0x72] sm:$0xff]
        %s280 = scalar_lea.vmem [#allocation2], 32
        %v281 = vld [vmem:[%s280] sm:$0xff]
        %v282 = vld [vmem:[%s280 + $0x10] sm:$0xff]
        %v283 = vld [vmem:[%s280 + $0x20] sm:$0xff]
        %v284 = vld [vmem:[%s280 + $0x30] sm:$0xff]
        %v285 = vld [vmem:[%s280 + $0x40] sm:$0xff]
        %v286 = vld [vmem:[%s280 + $0x50] sm:$0xff]
        %v287 = vld [vmem:[%s280 + $0x60] sm:$0xff]
        %v288 = vld [vmem:[%s280 + $0x70] sm:$0xff]
        %v289 = vld [vmem:[%s280 + $0x1] sm:$0xff]
        %v290 = vld [vmem:[%s280 + $0x11] sm:$0xff]
        %v291 = vld [vmem:[%s280 + $0x21] sm:$0xff]
        %v292 = vld [vmem:[%s280 + $0x31] sm:$0xff]
        %v293 = vld [vmem:[%s280 + $0x41] sm:$0xff]
        %v294 = vld [vmem:[%s280 + $0x51] sm:$0xff]
        %v295 = vld [vmem:[%s280 + $0x61] sm:$0xff]
        %v296 = vld [vmem:[%s280 + $0x71] sm:$0xff]
        %v297 = vld [vmem:[%s280 + $0x2] sm:$0xff]
        %v298 = vld [vmem:[%s280 + $0x12] sm:$0xff]
        %v299 = vld [vmem:[%s280 + $0x22] sm:$0xff]
        %v300 = vld [vmem:[%s280 + $0x32] sm:$0xff]
        %v301 = vld [vmem:[%s280 + $0x42] sm:$0xff]
        %v302 = vld [vmem:[%s280 + $0x52] sm:$0xff]
        %v303 = vld [vmem:[%s280 + $0x62] sm:$0xff]
        %v304 = vld [vmem:[%s280 + $0x72] sm:$0xff]
        %313 = vrot.lane.b32.xlu0 %v240, 8
        %v314 = vpop.permute.xlu0 %313
        %315 = vrot.lane.b32.xlu0 %v241, 8
        %v316 = vpop.permute.xlu0 %315
        %317 = vrot.lane.b32.xlu0 %v242, 8
        %v318 = vpop.permute.xlu0 %317
        %319 = vrot.lane.b32.xlu0 %v243, 8
        %v320 = vpop.permute.xlu0 %319
        %321 = vrot.lane.b32.xlu0 %v244, 8
        %v322 = vpop.permute.xlu0 %321
        %323 = vrot.lane.b32.xlu0 %v245, 8
        %v324 = vpop.permute.xlu0 %323
        %325 = vrot.lane.b32.xlu0 %v246, 8
        %v326 = vpop.permute.xlu0 %325
        %327 = vrot.lane.b32.xlu0 %v247, 8
        %v328 = vpop.permute.xlu0 %327
        %345 = vrot.lane.b32.xlu0 %v248, 16
        %v346 = vpop.permute.xlu0 %345
        %347 = vrot.lane.b32.xlu0 %v249, 16
        %v348 = vpop.permute.xlu0 %347
        %349 = vrot.lane.b32.xlu0 %v250, 16
        %v350 = vpop.permute.xlu0 %349
        %351 = vrot.lane.b32.xlu0 %v251, 16
        %v352 = vpop.permute.xlu0 %351
        %353 = vrot.lane.b32.xlu0 %v252, 16
        %v354 = vpop.permute.xlu0 %353
        %355 = vrot.lane.b32.xlu0 %v253, 16
        %v356 = vpop.permute.xlu0 %355
        %357 = vrot.lane.b32.xlu0 %v254, 16
        %v358 = vpop.permute.xlu0 %357
        %359 = vrot.lane.b32.xlu0 %v255, 16
        %v360 = vpop.permute.xlu0 %359
        %377 = vrot.lane.b32.xlu0 %v256, 24
        %v378 = vpop.permute.xlu0 %377
        %379 = vrot.lane.b32.xlu0 %v257, 24
        %v380 = vpop.permute.xlu0 %379
        %381 = vrot.lane.b32.xlu0 %v258, 24
        %v382 = vpop.permute.xlu0 %381
        %383 = vrot.lane.b32.xlu0 %v259, 24
        %v384 = vpop.permute.xlu0 %383
        %385 = vrot.lane.b32.xlu0 %v260, 24
        %v386 = vpop.permute.xlu0 %385
        %387 = vrot.lane.b32.xlu0 %v261, 24
        %v388 = vpop.permute.xlu0 %387
        %389 = vrot.lane.b32.xlu0 %v262, 24
        %v390 = vpop.permute.xlu0 %389
        %391 = vrot.lane.b32.xlu0 %v263, 24
        %v392 = vpop.permute.xlu0 %391
        %409 = vrot.lane.b32.xlu0 %v264, 32
        %v410 = vpop.permute.xlu0 %409
        %411 = vrot.lane.b32.xlu0 %v265, 32
        %v412 = vpop.permute.xlu0 %411
        %413 = vrot.lane.b32.xlu0 %v266, 32
        %v414 = vpop.permute.xlu0 %413
        %415 = vrot.lane.b32.xlu0 %v267, 32
        %v416 = vpop.permute.xlu0 %415
        %417 = vrot.lane.b32.xlu0 %v268, 32
        %v418 = vpop.permute.xlu0 %417
        %419 = vrot.lane.b32.xlu0 %v269, 32
        %v420 = vpop.permute.xlu0 %419
        %421 = vrot.lane.b32.xlu0 %v270, 32
        %v422 = vpop.permute.xlu0 %421
        %423 = vrot.lane.b32.xlu0 %v271, 32
        %v424 = vpop.permute.xlu0 %423
        %441 = vrot.lane.b32.xlu0 %v272, 40
        %v442 = vpop.permute.xlu0 %441
        %443 = vrot.lane.b32.xlu0 %v273, 40
        %v444 = vpop.permute.xlu0 %443
        %445 = vrot.lane.b32.xlu0 %v274, 40
        %v446 = vpop.permute.xlu0 %445
        %447 = vrot.lane.b32.xlu0 %v275, 40
        %v448 = vpop.permute.xlu0 %447
        %449 = vrot.lane.b32.xlu0 %v276, 40
        %v450 = vpop.permute.xlu0 %449
        %451 = vrot.lane.b32.xlu0 %v277, 40
        %v452 = vpop.permute.xlu0 %451
        %453 = vrot.lane.b32.xlu0 %v278, 40
        %v454 = vpop.permute.xlu0 %453
        %455 = vrot.lane.b32.xlu0 %v279, 40
        %v456 = vpop.permute.xlu0 %455
        %473 = vrot.lane.b32.xlu0 %v281, 48
        %v474 = vpop.permute.xlu0 %473
        %475 = vrot.lane.b32.xlu0 %v282, 48
        %v476 = vpop.permute.xlu0 %475
        %477 = vrot.lane.b32.xlu0 %v283, 48
        %v478 = vpop.permute.xlu0 %477
        %479 = vrot.lane.b32.xlu0 %v284, 48
        %v480 = vpop.permute.xlu0 %479
        %481 = vrot.lane.b32.xlu0 %v285, 48
        %v482 = vpop.permute.xlu0 %481
        %483 = vrot.lane.b32.xlu0 %v286, 48
        %v484 = vpop.permute.xlu0 %483
        %485 = vrot.lane.b32.xlu0 %v287, 48
        %v486 = vpop.permute.xlu0 %485
        %487 = vrot.lane.b32.xlu0 %v288, 48
        %v488 = vpop.permute.xlu0 %487
        %505 = vrot.lane.b32.xlu0 %v289, 56
        %v506 = vpop.permute.xlu0 %505
        %507 = vrot.lane.b32.xlu0 %v290, 56
        %v508 = vpop.permute.xlu0 %507
        %509 = vrot.lane.b32.xlu0 %v291, 56
        %v510 = vpop.permute.xlu0 %509
        %511 = vrot.lane.b32.xlu0 %v292, 56
        %v512 = vpop.permute.xlu0 %511
        %513 = vrot.lane.b32.xlu0 %v293, 56
        %v514 = vpop.permute.xlu0 %513
        %515 = vrot.lane.b32.xlu0 %v294, 56
        %v516 = vpop.permute.xlu0 %515
        %517 = vrot.lane.b32.xlu0 %v295, 56
        %v518 = vpop.permute.xlu0 %517
        %519 = vrot.lane.b32.xlu0 %v296, 56
        %v520 = vpop.permute.xlu0 %519
        %537 = vrot.lane.b32.xlu0 %v297, 64
        %v538 = vpop.permute.xlu0 %537
        %539 = vrot.lane.b32.xlu0 %v298, 64
        %v540 = vpop.permute.xlu0 %539
        %541 = vrot.lane.b32.xlu0 %v299, 64
        %v542 = vpop.permute.xlu0 %541
        %543 = vrot.lane.b32.xlu0 %v300, 64
        %v544 = vpop.permute.xlu0 %543
        %545 = vrot.lane.b32.xlu0 %v301, 64
        %v546 = vpop.permute.xlu0 %545
        %547 = vrot.lane.b32.xlu0 %v302, 64
        %v548 = vpop.permute.xlu0 %547
        %549 = vrot.lane.b32.xlu0 %v303, 64
        %v550 = vpop.permute.xlu0 %549
        %551 = vrot.lane.b32.xlu0 %v304, 64
        %v552 = vpop.permute.xlu0 %551
        %v561 = vsel %vm193, %v232, %v314
        %v562 = vsel %vm193, %v233, %v316
        %v563 = vsel %vm193, %v234, %v318
        %v564 = vsel %vm193, %v235, %v320
        %v565 = vsel %vm193, %v236, %v322
        %v566 = vsel %vm193, %v237, %v324
        %v567 = vsel %vm193, %v238, %v326
        %v568 = vsel %vm193, %v239, %v328
        %vm569 = vcmask 130048
        %v570 = vsel %vm569, %v561, %v346
        %v571 = vsel %vm569, %v562, %v348
        %v572 = vsel %vm569, %v563, %v350
        %v573 = vsel %vm569, %v564, %v352
        %v574 = vsel %vm569, %v565, %v354
        %v575 = vsel %vm569, %v566, %v356
        %v576 = vsel %vm569, %v567, %v358
        %v577 = vsel %vm569, %v568, %v360
        %vm578 = vcmask 195584
        %v579 = vsel %vm578, %v570, %v378
        %v580 = vsel %vm578, %v571, %v380
        %v581 = vsel %vm578, %v572, %v382
        %v582 = vsel %vm578, %v573, %v384
        %v583 = vsel %vm578, %v574, %v386
        %v584 = vsel %vm578, %v575, %v388
        %v585 = vsel %vm578, %v576, %v390
        %v586 = vsel %vm578, %v577, %v392
        %vm587 = vcmask 261120
        %v588 = vsel %vm587, %v579, %v410
        %v589 = vsel %vm587, %v580, %v412
        %v590 = vsel %vm587, %v581, %v414
        %v591 = vsel %vm587, %v582, %v416
        %v592 = vsel %vm587, %v583, %v418
        %v593 = vsel %vm587, %v584, %v420
        %v594 = vsel %vm587, %v585, %v422
        %v595 = vsel %vm587, %v586, %v424
        %vm596 = vcmask 326656
        %v597 = vsel %vm596, %v588, %v442
        %v598 = vsel %vm596, %v589, %v444
        %v599 = vsel %vm596, %v590, %v446
        %v600 = vsel %vm596, %v591, %v448
        %v601 = vsel %vm596, %v592, %v450
        %v602 = vsel %vm596, %v593, %v452
        %v603 = vsel %vm596, %v594, %v454
        %v604 = vsel %vm596, %v595, %v456
        %vm605 = vcmask 392192
        %v606 = vsel %vm605, %v597, %v474
        %v607 = vsel %vm605, %v598, %v476
        %v608 = vsel %vm605, %v599, %v478
        %v609 = vsel %vm605, %v600, %v480
        %v610 = vsel %vm605, %v601, %v482
        %v611 = vsel %vm605, %v602, %v484
        %v612 = vsel %vm605, %v603, %v486
        %v613 = vsel %vm605, %v604, %v488
        %vm614 = vcmask 457728
        %v615 = vsel %vm614, %v606, %v506
        %v616 = vsel %vm614, %v607, %v508
        %v617 = vsel %vm614, %v608, %v510
        %v618 = vsel %vm614, %v609, %v512
        %v619 = vsel %vm614, %v610, %v514
        %v620 = vsel %vm614, %v611, %v516
        %v621 = vsel %vm614, %v612, %v518
        %v622 = vsel %vm614, %v613, %v520
        %vm623 = vcmask 523264
        %v624 = vsel %vm623, %v615, %v538
        %v625 = vsel %vm623, %v616, %v540
        %v626 = vsel %vm623, %v617, %v542
        %v627 = vsel %vm623, %v618, %v544
        %v628 = vsel %vm623, %v619, %v546
        %v629 = vsel %vm623, %v620, %v548
        %v630 = vsel %vm623, %v621, %v550
        %v631 = vsel %vm623, %v622, %v552
        %v632 = vld [vmem:[%s1] sm:$0xff]
        %v633 = vld [vmem:[%s1 + $0x8] sm:$0xff]
        %v634 = vld [vmem:[%s1 + $0x10] sm:$0xff]
        %v635 = vld [vmem:[%s1 + $0x18] sm:$0xff]
        %v636 = vld [vmem:[%s1 + $0x20] sm:$0xff]
        %v637 = vld [vmem:[%s1 + $0x28] sm:$0xff]
        %v638 = vld [vmem:[%s1 + $0x30] sm:$0xff]
        %v639 = vld [vmem:[%s1 + $0x38] sm:$0xff]
        %v640 = vld [vmem:[%s1 + $0x40] sm:$0xff]
        %v641 = vld [vmem:[%s2] sm:$0x1]
        %v643 = vperm.slane %v641, 0
        %vm645 = vcmask 588800
        %v647 = vsel %vm645, %v624, 0
        %v650 = vsel %vm645, %v625, 0
        %v653 = vsel %vm645, %v626, 0
        %v656 = vsel %vm645, %v627, 0
        %v659 = vsel %vm645, %v628, 0
        %v662 = vsel %vm645, %v629, 0
        %v665 = vsel %vm645, %v630, 0
        %v668 = vsel %vm645, %v631, 0
        %670 = vmatpush.msra.mxu0 0.0
        %671 = vmatpush.msra.mxu0 0.0
        %672 = vmatpush.msra.mxu0 0.0
        %673 = vmatpush.msra.mxu0 0.0
        %674 = vmatpush.msra.mxu0 0.0
        %675 = vmatpush.msra.mxu0 0.0
        %676 = vmatpush.msra.mxu0 0.0
        %677 = vmatpush.msra.mxu0 %v640
        %678 = vmatpush.msra.mxu0 %v639
        %679 = vmatpush.msra.mxu0 %v638
        %680 = vmatpush.msra.mxu0 %v637
        %681 = vmatpush.msra.mxu0 %v636
        %682 = vmatpush.msra.mxu0 %v635
        %683 = vmatpush.msra.mxu0 %v634
        %684 = vmatpush.msra.mxu0 %v633
        %685 = vmatpush.msra.mxu0 %v632
        %686 = vmatmul.f32.gmra.mxu0 %v647
        %v687 = vpop.f32.mrf.mxu0
        %v688 = vadd.f32 %v643, %v687
        %689 = vmatmul.f32.gmra.mxu0 %v650
        %v690 = vpop.f32.mrf.mxu0
        %v691 = vadd.f32 %v643, %v690
        %692 = vmatmul.f32.gmra.mxu0 %v653
        %v693 = vpop.f32.mrf.mxu0
        %v694 = vadd.f32 %v643, %v693
        %695 = vmatmul.f32.gmra.mxu0 %v656
        %v696 = vpop.f32.mrf.mxu0
        %v697 = vadd.f32 %v643, %v696
        %698 = vmatmul.f32.gmra.mxu0 %v659
        %v699 = vpop.f32.mrf.mxu0
        %v700 = vadd.f32 %v643, %v699
        %701 = vmatmul.f32.gmra.mxu0 %v662
        %v702 = vpop.f32.mrf.mxu0
        %v703 = vadd.f32 %v643, %v702
        %704 = vmatmul.f32.gmra.mxu0 %v665
        %v705 = vpop.f32.mrf.mxu0
        %v706 = vadd.f32 %v643, %v705
        %707 = vmatmul.f32.gmra.mxu0 %v668
        %v708 = vpop.f32.mrf.mxu0
        %v709 = vadd.f32 %v643, %v708
        %710 = vdwg.mxu0
        %711 = vst.msk [vmem:[%s192] sm:$0xff] %vm587, %v688
        %712 = vst.msk [vmem:[%s192 + $0x8] sm:$0xff] %vm587, %v691
        %713 = vst.msk [vmem:[%s192 + $0x10] sm:$0xff] %vm587, %v694
        %714 = vst.msk [vmem:[%s192 + $0x18] sm:$0xff] %vm587, %v697
        %715 = vst.msk [vmem:[%s192 + $0x20] sm:$0xff] %vm587, %v700
        %716 = vst.msk [vmem:[%s192 + $0x28] sm:$0xff] %vm587, %v703
        %717 = vst.msk [vmem:[%s192 + $0x30] sm:$0xff] %vm587, %v706
        %718 = vst.msk [vmem:[%s192 + $0x38] sm:$0xff] %vm587, %v709
        %p719 = scmp.lt.s32.totalorder %s17, 1
        %s720 = scalar_select %p719, %s17, 1
        %s721 = smul.addr %s720, 8
        %s722 = smul.addr %s721, 8
        %s723 = scalar_lea.vmem %s3, %s722
        // Predicated region
        $region37: #{tpu_custom_call.1} parent=31 // pred_check
          %p724 = pneg %p103
        $region38: #{tpu_custom_call.1} parent=31 // pred_check_branch
          %726 = sbr.rel (%p724) target = $region40
        $region39: #{tpu_custom_call.1} parent=31 // pred_region
          _
        $region40: #{tpu_custom_call.1} parent=31 // pred_fallthru
          _
      $region32: #{tpu_custom_call.1} parent=5 // pred_fallthru
        _
      %p727 = scmp.le.s32.totalorder 2, %s12
      // Predicated region
      $region41: #{tpu_custom_call.1} parent=5 // pred_check
        %p728 = pneg %p727
      $region42: #{tpu_custom_call.1} parent=5 // pred_check_branch
        %730 = sbr.rel (%p728) target = $region44
      $region43: #{tpu_custom_call.1} parent=5 // pred_region
        %s731 = ssub.s32 %s12, 2
        // Predicated region
        $region45: #{tpu_custom_call.1} parent=43 // pred_check
          %p732 = pneg %p109
        $region46: #{tpu_custom_call.1} parent=43 // pred_check_branch
          %734 = sbr.rel (%p732) target = $region48
        $region47: #{tpu_custom_call.1} parent=43 // pred_region
          %p735 = scmp.lt.s32.totalorder %s18, 1
          %s736 = scalar_select %p735, %s18, 1
          %s737 = smul.addr %s736, 8
          %s738 = smul.addr %s737, 8
          %s739 = scalar_lea.vmem %s3, %s738
        $region48: #{tpu_custom_call.1} parent=43 // pred_fallthru
          _
      $region44: #{tpu_custom_call.1} parent=5 // pred_fallthru
        _
    $region6: #{tpu_custom_call.1} parent=1 // loop_footer
      %s16 = sadd.s32 1, %s12
    $region7: #{tpu_custom_call.1} parent=1 // loop_footer_branch
      %11 = sbr.rel target = $region3
    $region8: #{tpu_custom_call.1} parent=1 // loop_exit
      _
    %740 = vsyncpa [#allocation4], 1
    %s741 = scalar_lea.sflag [#allocation4], 1
    %742 = vsyncpa %s741, 1

</llo_original>
